<compile_context>
chip_gen: v6e
topology: v6e:2x2x1
jax: 0.10.0
libtpu: 0.0.40
codegen_flags: <defaults>
</compile_context>

<pallas_src>
import functools

import jax
import jax.numpy as jnp
from jax.experimental import pallas as pl
from jax.experimental.pallas import tpu as pltpu


def _reward_head_kernel(x_ref, w_ref, b_ref, v_ref, out_ref, acc_ref,
                        *, tb, seq, inv_seq):
    """One grid step (i = row tile of tb*seq tokens, k = K tile of hidden dim).

    x_ref:   (tm, tk)  f32   VMEM   (tm = tb * seq rows of flattened tokens)
    w_ref:   (tk, H)   bf16  VMEM   (K-tiled weights, full output width)
    b_ref:   (1, H)    f32   VMEM
    v_ref:   (1, H)    f32   VMEM   (value head as a broadcast row)
    out_ref: (tb, 1)   f32   VMEM   (per-batch rewards for this row tile)
    acc_ref: (tm, H)   f32   VMEM scratch (pre-activation accumulator)
    """
    k = pl.program_id(1)

    @pl.when(k == 0)
    def _init():
        acc_ref[...] = jnp.zeros_like(acc_ref)

    # bf16 MXU matmul (in-kernel cast of x), f32 accumulation over K tiles.
    acc_ref[...] += jnp.dot(x_ref[...].astype(jnp.bfloat16), w_ref[...],
                            preferred_element_type=jnp.float32)

    @pl.when(k == pl.num_programs(1) - 1)
    def _finalize():
        # Bias + tanh only after the full-K accumulation (f32 on the VPU/EUP).
        h = jnp.tanh(acc_ref[...] + b_ref[...])                  # (tm, H) f32
        # v-projection as VPU multiply + lane reduction (no N=1 MXU matmul).
        scores = jnp.sum(h * v_ref[...], axis=1, keepdims=True)  # (tm, 1)
        per_batch = scores.reshape(tb, seq)                      # tm = tb * seq
        out_ref[...] = jnp.sum(per_batch, axis=1, keepdims=True) * inv_seq


def _choose_row_tile(B, S):
    """Rows per grid step = tb * S (whole sequences only, so each row tile owns
    a disjoint (tb, 1) slice of the output).  Falls back to a single tile when
    the Mosaic (8, 128) block constraints cannot be met."""
    target_rows = 512
    tb = max(1, min(B, target_rows // max(S, 1)))
    while tb > 1 and B % tb:
        tb -= 1
    # Output block (tb, 1): sublane dim must be 8-divisible unless tb == B.
    # x block (tm, tk): sublane dim tm must be 8-divisible unless tm == B*S.
    if tb != B and (tb % 8 or (tb * S) % 8):
        tb = B
    return tb, tb * S


def _choose_k_tile(H):
    """K tile for the hidden-dim reduction (lane dim of x, sublane dim of W)."""
    if H <= 512:
        return H
    tk = 512
    while tk >= 128 and H % tk:
        tk //= 2
    return tk if tk >= 128 and H % tk == 0 else H


def reward_forward(x, w, b, v):
    """x: (B, S, H) f32, w: (H, H), b: (1, H) or (H,), v: (H, 1) or (H,)
    -> rewards (B, 1) f32."""
    B, S, H = x.shape
    M = B * S

    # Layout plumbing in the wrapper (free / cheap): flatten tokens, cast the
    # reused weight matrix to bf16, present bias / value head as broadcast rows.
    x2d = x.reshape(M, H)                          # f32, cast in-kernel
    w_bf = w.astype(jnp.bfloat16)
    b_row = jnp.asarray(b, jnp.float32).reshape(1, H)
    v_row = jnp.asarray(v, jnp.float32).reshape(1, H)

    tb, tm = _choose_row_tile(B, S)
    tk = _choose_k_tile(H)
    grid = (M // tm, H // tk)

    kernel = functools.partial(_reward_head_kernel,
                               tb=tb, seq=S, inv_seq=float(1.0 / S))

    # Explicit VMEM budget: double-buffered streamed inputs + f32 accumulator,
    # kept conservative so it is also valid on v7x's 64 MiB VMEM.
    work_bytes = (2 * tm * tk * 4) + (2 * tk * H * 2) + (tm * H * 4) + (4 * H * 4)
    vmem_limit = int(min(max(2 * work_bytes, 16 * 1024 * 1024), 48 * 1024 * 1024))

    return pl.pallas_call(
        kernel,
        out_shape=jax.ShapeDtypeStruct((B, 1), jnp.float32),
        grid_spec=pltpu.PrefetchScalarGridSpec(
            num_scalar_prefetch=0,
            grid=grid,
            in_specs=[
                pl.BlockSpec((tm, tk), lambda i, k: (i, k)),   # x tokens (f32)
                pl.BlockSpec((tk, H), lambda i, k: (k, 0)),    # W (K-tiled, bf16)
                pl.BlockSpec((1, H), lambda i, k: (0, 0)),     # bias row
                pl.BlockSpec((1, H), lambda i, k: (0, 0)),     # value-head row
            ],
            out_specs=pl.BlockSpec((tb, 1), lambda i, k: (i, 0)),
            scratch_shapes=[pltpu.VMEM((tm, H), jnp.float32)],
        ),
        compiler_params=pltpu.CompilerParams(
            dimension_semantics=("parallel", "arbitrary"),
            vmem_limit_bytes=vmem_limit,
        ),
    )(x2d, w_bf, b_row, v_row)


def reference_forward(x, w, b, v):
    # Reference applies the same bf16 rounding the MXU path sees.
    xf = x.astype(jnp.bfloat16).astype(jnp.float32)
    wf = w.astype(jnp.bfloat16).astype(jnp.float32)
    h = jnp.tanh(jnp.einsum("bsh,hk->bsk", xf, wf) + jnp.reshape(b, (1, 1, -1)))
    scores = jnp.einsum("bsk,k->bs", h, jnp.reshape(v, (-1,)))
    return jnp.mean(scores, axis=1, keepdims=True)


if __name__ == "__main__":
    B, S, H = 2, 8, 32

    key = jax.random.PRNGKey(0)
    kx, kw, kb, kv = jax.random.split(key, 4)

    x = jax.random.normal(kx, (B, S, H), dtype=jnp.float32)
    # Deterministic synthetic reward-head parameters.
    w = jax.random.normal(kw, (H, H), dtype=jnp.float32) * (1.0 / jnp.sqrt(H))
    b = jax.random.normal(kb, (1, H), dtype=jnp.float32) * 0.01
    v = jax.random.normal(kv, (H, 1), dtype=jnp.float32) * (1.0 / jnp.sqrt(H))

    out = jax.block_until_ready(reward_forward(x, w, b, v))
    ref = reference_forward(x, w, b, v)

    assert out.shape == (B, 1)
    assert jnp.allclose(out, ref, atol=1e-4, rtol=1e-4), (out, ref)

    print("KERNEL_OK")
</pallas_src>

<mosaic_0001>
module attributes {stable_mosaic.version = 11 : i64} {
  func.func @_reward_head_kernel(%arg0: i32, %arg1: i32, %arg2: memref<16x32xf32, #tpu.memory_space<vmem>>, %arg3: memref<32x32xbf16, #tpu.memory_space<vmem>>, %arg4: memref<1x32xf32, #tpu.memory_space<vmem>>, %arg5: memref<1x32xf32, #tpu.memory_space<vmem>>, %arg6: memref<2x1xf32, #tpu.memory_space<vmem>>, %arg7: memref<16x32xf32, #tpu.memory_space<vmem>>) attributes {dimension_semantics = [#tpu.dimension_semantics<parallel>, #tpu.dimension_semantics<arbitrary>], iteration_bounds = array<i64: 1, 1>, scalar_prefetch = 0 : i64, scratch_operands = 1 : i64, tpu.core_type = #tpu.core_type<tc>, window_params = [{transform_indices = @transform_0, window_bounds = array<i64: 16, 32>}, {transform_indices = @transform_1, window_bounds = array<i64: 32, 32>}, {pipeline_mode = #tpu.pipeline_mode<synchronous>, transform_indices = @transform_2, window_bounds = array<i64: 1, 32>}, {pipeline_mode = #tpu.pipeline_mode<synchronous>, transform_indices = @transform_3, window_bounds = array<i64: 1, 32>}, {transform_indices = @transform_4, window_bounds = array<i64: 2, 1>}]} {
    %c0_i32 = arith.constant 0 : i32
    %0 = arith.cmpi eq, %arg1, %c0_i32 : i32
    %1 = arith.extui %0 : i1 to i32
    %c0_i32_0 = arith.constant 0 : i32
    %2 = arith.cmpi ne, %1, %c0_i32_0 : i32
    scf.if %2 {
      %cst_10 = arith.constant 0.000000e+00 : f32
      %13 = vector.broadcast %cst_10 : f32 to vector<16x32xf32>
      %c0_11 = arith.constant 0 : index
      %c0_12 = arith.constant 0 : index
      %14 = vector.load %arg7[%c0_11, %c0_12] : memref<16x32xf32, #tpu.memory_space<vmem>>, vector<16x32xf32>
      tpu.vector_store %arg7[%c0_11, %c0_12], %13 {strides = array<i32>} : memref<16x32xf32, #tpu.memory_space<vmem>>, vector<16x32xf32>,
    } else {
    }
    %c0 = arith.constant 0 : index
    %c0_1 = arith.constant 0 : index
    %3 = vector.load %arg7[%c0, %c0_1] : memref<16x32xf32, #tpu.memory_space<vmem>>, vector<16x32xf32>
    %c0_2 = arith.constant 0 : index
    %c0_3 = arith.constant 0 : index
    %4 = vector.load %arg2[%c0_2, %c0_3] : memref<16x32xf32, #tpu.memory_space<vmem>>, vector<16x32xf32>
    %5 = arith.truncf %4 : vector<16x32xf32> to vector<16x32xbf16>
    %c0_4 = arith.constant 0 : index
    %c0_5 = arith.constant 0 : index
    %6 = vector.load %arg3[%c0_4, %c0_5] : memref<32x32xbf16, #tpu.memory_space<vmem>>, vector<32x32xbf16>
    %cst = arith.constant dense<0.000000e+00> : vector<16x32xf32>
    %7 = tpu.matmul %5, %6, %cst {dimension_numbers = #tpu.dot_dimension_numbers<[1], [0], [0], [1], [0, 0, 1, 1], [], []>} : vector<16x32xbf16>, vector<32x32xbf16>, vector<16x32xf32> -> vector<16x32xf32>
    %8 = arith.addf %3, %7 : vector<16x32xf32>
    %c0_6 = arith.constant 0 : index
    %c0_7 = arith.constant 0 : index
    %9 = vector.load %arg7[%c0_6, %c0_7] : memref<16x32xf32, #tpu.memory_space<vmem>>, vector<16x32xf32>
    tpu.vector_store %arg7[%c0_6, %c0_7], %8 {strides = array<i32>} : memref<16x32xf32, #tpu.memory_space<vmem>>, vector<16x32xf32>,
    %c0_i32_8 = arith.constant 0 : i32
    %10 = arith.cmpi eq, %arg1, %c0_i32_8 : i32
    %11 = arith.extui %10 : i1 to i32
    %c0_i32_9 = arith.constant 0 : i32
    %12 = arith.cmpi ne, %11, %c0_i32_9 : i32
    scf.if %12 {
      %c0_10 = arith.constant 0 : index
      %c0_11 = arith.constant 0 : index
      %13 = vector.load %arg7[%c0_10, %c0_11] : memref<16x32xf32, #tpu.memory_space<vmem>>, vector<16x32xf32>
      %c0_12 = arith.constant 0 : index
      %c0_13 = arith.constant 0 : index
      %14 = vector.load %arg4[%c0_12, %c0_13] : memref<1x32xf32, #tpu.memory_space<vmem>>, vector<1x32xf32>
      %15 = vector.broadcast %14 : vector<1x32xf32> to vector<16x32xf32>
      %16 = arith.addf %13, %15 : vector<16x32xf32>
      %17 = math.tanh %16 : vector<16x32xf32>
      %c0_14 = arith.constant 0 : index
      %c0_15 = arith.constant 0 : index
      %18 = vector.load %arg5[%c0_14, %c0_15] : memref<1x32xf32, #tpu.memory_space<vmem>>, vector<1x32xf32>
      %19 = vector.broadcast %18 : vector<1x32xf32> to vector<16x32xf32>
      %20 = arith.mulf %17, %19 : vector<16x32xf32>
      %cst_16 = arith.constant dense<0.000000e+00> : vector<16xf32>
      %21 = vector.multi_reduction <add>, %20, %cst_16 [1] : vector<16x32xf32> to vector<16xf32>
      %22 = vector.shape_cast %21 : vector<16xf32> to vector<16x1xf32>
      %23 = vector.shape_cast %22 : vector<16x1xf32> to vector<2x8xf32>
      %cst_17 = arith.constant dense<0.000000e+00> : vector<2xf32>
      %24 = vector.multi_reduction <add>, %23, %cst_17 [1] : vector<2x8xf32> to vector<2xf32>
      %25 = vector.shape_cast %24 : vector<2xf32> to vector<2x1xf32>
      %cst_18 = arith.constant 1.250000e-01 : f32
      %26 = vector.broadcast %cst_18 : f32 to vector<2x1xf32>
      %27 = arith.mulf %25, %26 : vector<2x1xf32>
      %c0_19 = arith.constant 0 : index
      %c0_20 = arith.constant 0 : index
      %28 = vector.load %arg6[%c0_19, %c0_20] : memref<2x1xf32, #tpu.memory_space<vmem>>, vector<2x1xf32>
      tpu.vector_store %arg6[%c0_19, %c0_20], %27 {strides = array<i32>} : memref<2x1xf32, #tpu.memory_space<vmem>>, vector<2x1xf32>,
    } else {
    }
    return
  }
  func.func @transform_0(%arg0: i32, %arg1: i32) -> (i32, i32) {
    %c0_i32 = arith.constant 0 : i32
    return %arg0, %arg1 : i32, i32
  }
  func.func @transform_1(%arg0: i32, %arg1: i32) -> (i32, i32) {
    %c0_i32 = arith.constant 0 : i32
    %c0_i32_0 = arith.constant 0 : i32
    return %arg1, %c0_i32 : i32, i32
  }
  func.func @transform_2(%arg0: i32, %arg1: i32) -> (i32, i32) {
    %c0_i32 = arith.constant 0 : i32
    %c0_i32_0 = arith.constant 0 : i32
    %c0_i32_1 = arith.constant 0 : i32
    return %c0_i32, %c0_i32_0 : i32, i32
  }
  func.func @transform_3(%arg0: i32, %arg1: i32) -> (i32, i32) {
    %c0_i32 = arith.constant 0 : i32
    %c0_i32_0 = arith.constant 0 : i32
    %c0_i32_1 = arith.constant 0 : i32
    return %c0_i32, %c0_i32_0 : i32, i32
  }
  func.func @transform_4(%arg0: i32, %arg1: i32) -> (i32, i32) {
    %c0_i32 = arith.constant 0 : i32
    %c0_i32_0 = arith.constant 0 : i32
    return %arg0, %c0_i32 : i32, i32
  }
}

</mosaic_0001>

<llo_original>
// kernel: tpu_custom_call.1
$region0: #{tpu_custom_call.1}
  #allocation0 [shape = 'u32[]', space=smem, size = 0x4, offset = 0x4, fixed_abs, tag = 'smem constant byte address 0x4 - core index']
  #allocation1 [shape = 'u32[144,128]{1,0:T(1,128)}', space=vmem, size = 0x12000, scoped, tag = 'internal scratch']
  #allocation2 [shape = 'f32[16,32]{1,0:T(8,128)}', space=vmem, size = 0x2000, scoped, tag = 'scratch operand']
  %s0 = inlined_call_operand.hbm [shape: f32[16,32], index: 0, kind: input, shape index: {}]
  %s1 = inlined_call_operand.hbm [shape: bf16[32,32], index: 1, kind: input, shape index: {}]
  %s2 = inlined_call_operand.vmem [shape: f32[1,32], index: 2, kind: input, shape index: {}]
  %s3 = inlined_call_operand.vmem [shape: f32[1,32], index: 3, kind: input, shape index: {}]
  %s4 = inlined_call_operand.vmem [shape: f32[2,1], index: 4, kind: output, shape index: {}]
  %s5 = sld [smem:[#allocation0]]
  $region42: #{tpu_custom_call.1} parent=0
    _
  %s7 = ssub.s32 1, %s5
  %s8 = scalar_select 0, %s7, %s5
  $region1: #{tpu_custom_call.1} parent=0
    #allocation3 [shape = 'u8[8192]{0}', space=vmem, size = 0x2000, scoped, tag = 'input window, operand 0, single buffered']
    #allocation4 [shape = 's32[1]{0}', space=sflag, size = 0x4, scoped, tag = 'scoped memory for tpu_custom_call.1']
    #allocation5 [shape = 'u8[8192]{0}', space=vmem, size = 0x2000, scoped, tag = 'input window, operand 1, single buffered']
    #allocation6 [shape = 's32[1]{0}', space=sflag, size = 0x4, scoped, tag = 'scoped memory for tpu_custom_call.1']
    %9 = vsyncpa [#allocation4], 0
    %10 = vsyncpa [#allocation6], 0
    // Predicated region
    $region2: #{tpu_custom_call.1} parent=1 // pred_check
      _
    $region3: #{tpu_custom_call.1} parent=1 // pred_check_branch
      %12 = sbr.rel (0) target = $region5
    $region4: #{tpu_custom_call.1} parent=1 // pred_region
      %s14 = ssub.s32 256, 256
      %15 = vsyncadd [#allocation4], %s14
      %s16 = sshll.u32 [#allocation3], 4
      %s17 = int_to_ptr.vmem [resolvable:$true] %s16
      %22 = dma.hbm_to_vmem [thread:$0]  %s0, 256, %s17, [#allocation4], 128, 128, 8
    $region5: #{tpu_custom_call.1} parent=1 // pred_fallthru
      _
    // Predicated region
    $region6: #{tpu_custom_call.1} parent=1 // pred_check
      _
    $region7: #{tpu_custom_call.1} parent=1 // pred_check_branch
      %24 = sbr.rel (0) target = $region9
    $region8: #{tpu_custom_call.1} parent=1 // pred_region
      %s26 = ssub.s32 256, 256
      %27 = vsyncadd [#allocation6], %s26
      %s28 = sshll.u32 [#allocation5], 4
      %s29 = int_to_ptr.vmem [resolvable:$true] %s28
      %34 = dma.hbm_to_vmem [thread:$0]  %s1, 256, %s29, [#allocation6], 64, 64, 4
    $region9: #{tpu_custom_call.1} parent=1 // pred_fallthru
      _
    // Predicated region
    $region10: #{tpu_custom_call.1} parent=1 // pred_check
      _
    $region11: #{tpu_custom_call.1} parent=1 // pred_check_branch
      %36 = sbr.rel (0) target = $region13
    $region12: #{tpu_custom_call.1} parent=1 // pred_region
      _
    $region13: #{tpu_custom_call.1} parent=1 // pred_fallthru
      _
    // Predicated region
    $region14: #{tpu_custom_call.1} parent=1 // pred_check
      _
    $region15: #{tpu_custom_call.1} parent=1 // pred_check_branch
      %38 = sbr.rel (0) target = $region17
    $region16: #{tpu_custom_call.1} parent=1 // pred_region
      _
    $region17: #{tpu_custom_call.1} parent=1 // pred_fallthru
      _
    // Predicated region
    $region18: #{tpu_custom_call.1} parent=1 // pred_check
      _
    $region19: #{tpu_custom_call.1} parent=1 // pred_check_branch
      %40 = sbr.rel (0) target = $region21
    $region20: #{tpu_custom_call.1} parent=1 // pred_region
      %41 = dma.done [#allocation4], 256
    $region21: #{tpu_custom_call.1} parent=1 // pred_fallthru
      _
    // Predicated region
    $region22: #{tpu_custom_call.1} parent=1 // pred_check
      _
    $region23: #{tpu_custom_call.1} parent=1 // pred_check_branch
      %43 = sbr.rel (0) target = $region25
    $region24: #{tpu_custom_call.1} parent=1 // pred_region
      %44 = dma.done [#allocation6], 256
    $region25: #{tpu_custom_call.1} parent=1 // pred_fallthru
      _
    %p46 = scmp.eq.s32.totalorder 0, 0
    // Predicated region
    $region26: #{tpu_custom_call.1} parent=1 // pred_check
      %p47 = pneg %p46
    $region27: #{tpu_custom_call.1} parent=1 // pred_check_branch
      %49 = sbr.rel (%p47) target = $region29
    $region28: #{tpu_custom_call.1} parent=1 // pred_region
      %vm50 = vcmask 261120
      %51 = vst.msk [vmem:[#allocation2] sm:$0xff] %vm50, 0.0
      %52 = vst.msk [vmem:[#allocation2 + $0x8] sm:$0xff] %vm50, 0.0
    $region29: #{tpu_custom_call.1} parent=1 // pred_fallthru
      _
    %v53 = vld [vmem:[#allocation2] sm:$0xff]
    %v54 = vld [vmem:[#allocation2 + $0x8] sm:$0xff]
    %v55 = vld [vmem:[#allocation3] sm:$0xff]
    %v56 = vld [vmem:[#allocation3 + $0x8] sm:$0xff]
    %v57 = vpack.c.bf16 %v56, %v55
    %v58 = vld [vmem:[#allocation5] sm:$0xf]
    %v59 = vld [vmem:[#allocation5 + $0x4] sm:$0xf]
    %v60 = vld [vmem:[#allocation5 + $0x8] sm:$0xf]
    %v61 = vld [vmem:[#allocation5 + $0xc] sm:$0xf]
    %v66 = vunpack.c.l.b16 %v58
    %v67 = vunpack.c.l.b16 %v59
    %v68 = vunpack.c.l.b16 %v60
    %v69 = vunpack.c.l.b16 %v61
    %v70 = vpack.c.b16 %v67, %v66
    %v71 = vpack.c.b16 %v69, %v68
    %vm74 = vcmask 261120
    %v76 = vsel %vm74, %v57, 0
    %78 = vmatprep.subr.bf16.mxu0 0
    %79 = vmatpush1.bf16.msra.mxu0 0
    %80 = vmatprep.subr.bf16.mxu0 0
    %81 = vmatpush1.bf16.msra.mxu0 0
    %82 = vmatprep.subr.bf16.mxu0 0
    %83 = vmatpush1.bf16.msra.mxu0 0
    %84 = vmatprep.subr.bf16.mxu0 0
    %85 = vmatpush1.bf16.msra.mxu0 0
    %86 = vmatprep.subr.bf16.mxu0 0
    %87 = vmatpush1.bf16.msra.mxu0 0
    %88 = vmatprep.subr.bf16.mxu0 0
    %89 = vmatpush1.bf16.msra.mxu0 0
    %90 = vmatprep.subr.bf16.mxu0 0
    %91 = vmatpush1.bf16.msra.mxu0 %v71
    %92 = vmatprep.subr.bf16.mxu0 0
    %93 = vmatpush1.bf16.msra.mxu0 %v70
    %94 = vmatprep.subr.bf16.mxu0 0
    %95 = vmatpush2.bf16.msra.mxu0 0
    %96 = vmatprep.subr.bf16.mxu0 0
    %97 = vmatpush2.bf16.msra.mxu0 0
    %98 = vmatprep.subr.bf16.mxu0 0
    %99 = vmatpush2.bf16.msra.mxu0 0
    %100 = vmatprep.subr.bf16.mxu0 0
    %101 = vmatpush2.bf16.msra.mxu0 0
    %102 = vmatprep.subr.bf16.mxu0 0
    %103 = vmatpush2.bf16.msra.mxu0 0
    %104 = vmatprep.subr.bf16.mxu0 0
    %105 = vmatpush2.bf16.msra.mxu0 0
    %106 = vmatprep.subr.bf16.mxu0 0
    %107 = vmatpush2.bf16.msra.mxu0 0
    %108 = vmatprep.subr.bf16.mxu0 0
    %109 = vmatpush2.bf16.msra.mxu0 0
    %110 = vmatprep.mubr.bf16.mxu0 0
    %111 = vmatmul.mubr.bf16.gmra.mxu0 %v76
    %v112 = vpop.f32.mrf.mxu0
    %v113 = vadd.f32 0.0, %v112
    %v114 = vpop.f32.mrf.mxu0
    %v115 = vpop.f32.mrf.mxu0
    %v116 = vadd.f32 0.0, %v115
    %v117 = vpop.f32.mrf.mxu0
    %118 = vdwg.mxu0
    %v119 = vadd.f32 %v53, %v113
    %v120 = vadd.f32 %v54, %v116
    %121 = vst.msk [vmem:[#allocation2] sm:$0xff] %vm74, %v119
    %122 = vst.msk [vmem:[#allocation2 + $0x8] sm:$0xff] %vm74, %v120
    // Predicated region
    $region30: #{tpu_custom_call.1} parent=1 // pred_check
      %p123 = pneg %p46
    $region31: #{tpu_custom_call.1} parent=1 // pred_check_branch
      %125 = sbr.rel (%p123) target = $region33
    $region32: #{tpu_custom_call.1} parent=1 // pred_region
      %v126 = vld [vmem:[#allocation2] sm:$0xff]
      %v127 = vld [vmem:[#allocation2 + $0x8] sm:$0xff]
      %v128 = vld [vmem:[%s2] sm:$0x1]
      %v130 = vlaneseq
      %v131 = vshrl.u32 %v130, 7
      %v132 = vsub.s32 0, %v131
      %v133 = vrot.slane %v128, %v132
      %v135 = vadd.f32 %v126, %v133
      %v136 = vadd.f32 %v127, %v133
      %v137 = vtanh.pop %v135
      %v138 = vtanh.pop %v136
      %v139 = vld [vmem:[%s3] sm:$0x1]
      %v141 = vlaneseq
      %v142 = vshrl.u32 %v141, 7
      %v143 = vsub.s32 0, %v142
      %v144 = vrot.slane %v139, %v143
      %v146 = vmul.f32 %v137, %v144
      %v147 = vmul.f32 %v138, %v144
      %v148 = vsel %vm74, %v146, 0.0
      %149 = vadd.xlane.f32.xlu0 %v148
      %v150 = vpop.xlane.xlu0 %149
      %v151 = vsel %vm74, %v147, 0.0
      %152 = vadd.xlane.f32.xlu0 %v151
      %v153 = vpop.xlane.xlu0 %152
      %v156 = vlaneseq
      %v157 = vand.u32 %v156, 127
      %v158 = vlaneseq
      %v159 = vshrl.u32 %v158, 7
      %v160 = vsub.s32 %v157, %v159
      %v161 = vrot.slane %v150, %v160
      %v162 = vlaneseq
      %v163 = vshrl.u32 %v162, 7
      %v164 = vsub.s32 %v157, %v163
      %v165 = vrot.slane %v153, %v164
      %vm166 = vcmask 1041409
      %v167 = vsel %vm166, %v165, %v161
      %vm169 = vcmask 58368
      %v170 = vsel %vm169, %v167, 0.0
      %171 = vadd.xlane.f32.xlu0 %v170
      %v172 = vpop.xlane.xlu0 %171
      %v173 = vmul.f32 %v172, 0.125
      %vm174 = vcmask 1024
      %175 = vst.msk [vmem:[%s4] sm:$0x3] %vm174, %v173
    $region33: #{tpu_custom_call.1} parent=1 // pred_fallthru
      _
    // Predicated region
    $region34: #{tpu_custom_call.1} parent=1 // pred_check
      _
    $region35: #{tpu_custom_call.1} parent=1 // pred_check_branch
      %177 = sbr.rel (0) target = $region37
    $region36: #{tpu_custom_call.1} parent=1 // pred_region
      _
    $region37: #{tpu_custom_call.1} parent=1 // pred_fallthru
      _
    // Predicated region
    $region38: #{tpu_custom_call.1} parent=1 // pred_check
      _
    $region39: #{tpu_custom_call.1} parent=1 // pred_check_branch
      %179 = sbr.rel (0) target = $region41
    $region40: #{tpu_custom_call.1} parent=1 // pred_region
      _
    $region41: #{tpu_custom_call.1} parent=1 // pred_fallthru
      _
    %180 = vsyncpa [#allocation4], 1
    %181 = vsyncpa [#allocation6], 1

</llo_original>
